<compile_context>
chip_gen: v5e
topology: v5e:2x2
jax: 0.10.0
libtpu: 0.0.40
codegen_flags: <defaults>
</compile_context>

<pallas_src>
import jax
import jax.numpy as jnp
from jax.experimental import pallas as pl
from jax.experimental.pallas import tpu as pltpu


def decoder_kernel(ids_ref, h0_ref, wcat_ref, wfc_ref, out_ref, x_scr, hx_scr):
    """One GRU decode step per grid index t (PyTorch gate order r,z,n) + Linear.

    ids_ref : SMEM  [T, B] int32   token ids (scalar prefetch)
    h0_ref  : VMEM  [B, H]         initial hidden (read at t==0 only)
    wcat_ref: VMEM  [V+H, 4H]      fused gate weight, gate biases folded into rows 0..V
    wfc_ref : VMEM  [H+1, V]       fc weight with fc bias as the last input row
    out_ref : VMEM  [B, H+V]       per-step output slab [hidden | pred]
    x_scr   : VMEM  [B, V+H]       gate input  x_cat = [onehot | h]
    hx_scr  : VMEM  [B, H+1]       carried hidden (+ constant-1 feature for fc bias)
    """
    t = pl.program_id(0)
    B, H = h0_ref.shape
    V_tok = wcat_ref.shape[0] - H            # vocab rows of the fused gate weight

    @pl.when(t == 0)
    def _():
        hx_scr[:, :H] = h0_ref[...]
        hx_scr[:, H:] = jnp.ones((B, 1), jnp.float32)   # constant-1 feature (fc bias)

    h = hx_scr[:, :H]                        # [B, H] carried hidden state

    # Embedding gather as an exact one-hot row selection (ids come from SMEM).
    lane = jax.lax.broadcasted_iota(jnp.int32, (B, V_tok), 1)
    sub = jax.lax.broadcasted_iota(jnp.int32, (B, V_tok), 0)
    onehot = jnp.zeros((B, V_tok), jnp.float32)
    for b in range(B):                       # B is small & static
        onehot = jnp.where((sub == b) & (lane == ids_ref[t, b]), 1.0, onehot)

    # x_cat = [onehot | h]  ->  single fused gate matmul (biases pre-folded):
    # g = [g_r | g_z | i_n + b_in | h_n + b_hn], one vreg wide (4H = 128 lanes).
    x_scr[:, :V_tok] = onehot
    x_scr[:, V_tok:] = h
    g = jnp.dot(x_scr[...], wcat_ref[...], preferred_element_type=jnp.float32)

    rz = jax.nn.sigmoid(g[:, :2 * H])        # one EUP pass for both r and z
    r, z = rz[:, :H], rz[:, H:]
    n = jnp.tanh(g[:, 2 * H:3 * H] + r * g[:, 3 * H:])
    h_new = (1.0 - z) * n + z * h            # [B, H]

    hx_scr[:, :H] = h_new                    # carry to next step; fc input = [h_new | 1]
    pred = jnp.dot(hx_scr[...], wfc_ref[...], preferred_element_type=jnp.float32)

    # Merged, lane-contiguous output slab: one writeback DMA per step.
    out_ref[:, :H] = h_new
    out_ref[:, H:] = pred


def prepare_params(params):
    """One-time host-side layout prep: pre-transpose, pre-fuse, pre-fold biases."""
    w_ih, w_hh = params["w_ih"], params["w_hh"]      # [3H, E], [3H, H] (torch layout)
    b_ih, b_hh = params["b_ih"], params["b_hh"]      # [1, 3H]
    emb = params["embedding"]                        # [V, E]
    H = w_hh.shape[1]
    E = w_ih.shape[1]
    hp = jax.lax.Precision.HIGHEST

    wir, wiz, win = w_ih[:H].T, w_ih[H:2 * H].T, w_ih[2 * H:].T   # [E, H] each
    whr, whz, whn = w_hh[:H].T, w_hh[H:2 * H].T, w_hh[2 * H:].T   # [H, H] each

    # x-path weight [E, 4H] = [W_ir | W_iz | W_in | 0]; fold the embedding table in.
    w_x = jnp.concatenate([wir, wiz, win, jnp.zeros((E, H), jnp.float32)], axis=1)
    w_tok = jnp.dot(emb, w_x, precision=hp)                        # [V, 4H]

    # Gate biases [b_ir+b_hr | b_iz+b_hz | b_in | b_hn] folded into every token
    # row (one-hot rows sum to exactly 1, so onehot @ (w_tok + b) == w_tok[id] + b).
    b_all = jnp.concatenate([b_ih[:, :H] + b_hh[:, :H],
                             b_ih[:, H:2 * H] + b_hh[:, H:2 * H],
                             b_ih[:, 2 * H:],
                             b_hh[:, 2 * H:]], axis=1)             # [1, 4H]
    w_tok = w_tok + b_all

    # h-path weight [H, 4H] = [W_hr | W_hz | 0 | W_hn]
    w_hid = jnp.concatenate([whr, whz, jnp.zeros((H, H), jnp.float32), whn], axis=1)

    # Single fused gate weight for x_cat = [onehot | h].
    w_cat = jnp.concatenate([w_tok, w_hid], axis=0)                # [V+H, 4H]

    # fc weight with the bias folded in as an extra (constant-1) input row.
    fc_ext = jnp.concatenate([params["fc_w"].T, params["fc_b"]], axis=0)   # [H+1, V]

    return {"w_cat": w_cat, "fc_ext": fc_ext}


def decoder_decode(ids_seq, prev_hidden, prepped):
    """T fused decoder steps (module.forward applied T times, hidden carried in
    VMEM) in ONE pallas_call.

    ids_seq: int32 [T, B]; prev_hidden: f32 [1, B, H].
    Returns (pred_seq [T, B, V], hidden_seq [T, B, H])."""
    T, B = ids_seq.shape
    H = prev_hidden.shape[-1]
    V = prepped["fc_ext"].shape[1]
    slab = H + V
    h0 = prev_hidden[0]                              # [B, H]

    grid_spec = pltpu.PrefetchScalarGridSpec(
        num_scalar_prefetch=1,                       # ids live in SMEM
        grid=(T,),
        in_specs=[
            pl.BlockSpec((B, H), lambda t, ids: (0, 0)),                   # h0
            pl.BlockSpec(prepped["w_cat"].shape, lambda t, ids: (0, 0)),   # resident
            pl.BlockSpec(prepped["fc_ext"].shape, lambda t, ids: (0, 0)),  # resident
        ],
        out_specs=pl.BlockSpec((None, B, slab), lambda t, ids: (t, 0, 0)),
        scratch_shapes=[
            pltpu.VMEM((B, prepped["w_cat"].shape[0]), jnp.float32),  # x_cat
            pltpu.VMEM((B, H + 1), jnp.float32),                      # hidden carry + 1
        ],
    )

    out = pl.pallas_call(
        decoder_kernel,
        out_shape=jax.ShapeDtypeStruct((T, B, slab), jnp.float32),
        grid_spec=grid_spec,
        compiler_params=pltpu.CompilerParams(
            dimension_semantics=("arbitrary",)),     # GRU recurrence is sequential
    )(ids_seq.astype(jnp.int32), h0, prepped["w_cat"], prepped["fc_ext"])

    hidden_seq = out[:, :, :H]                       # [T, B, H]
    pred_seq = out[:, :, H:]                         # [T, B, V]
    return pred_seq, hidden_seq


def decoder_forward(y_out, prev_hidden, prepped):
    """Exact module forward: y_out int32 [B]; prev_hidden f32 [1, B, H].
    Returns (pred [1, B, V], hidden [1, B, H])."""
    pred_seq, hidden_seq = decoder_decode(y_out.reshape(1, -1), prev_hidden, prepped)
    return pred_seq[0][None], hidden_seq[0][None]


def reference_forward(y_out, prev_hidden, params):
    """Pure-JAX reference of the original (unfused) math: torch.nn.GRU step + Linear."""
    hp = jax.lax.Precision.HIGHEST
    emb = jnp.take(params["embedding"], y_out, axis=0)
    h = prev_hidden[0]
    H = h.shape[-1]
    gi = jnp.dot(emb, params["w_ih"].T, precision=hp) + params["b_ih"][0]
    gh = jnp.dot(h, params["w_hh"].T, precision=hp) + params["b_hh"][0]
    r = jax.nn.sigmoid(gi[:, :H] + gh[:, :H])
    z = jax.nn.sigmoid(gi[:, H:2 * H] + gh[:, H:2 * H])
    n = jnp.tanh(gi[:, 2 * H:] + r * gh[:, 2 * H:])
    h_new = (1.0 - z) * n + z * h
    pred = jnp.dot(h_new, params["fc_w"].T, precision=hp) + params["fc_b"][0]
    return pred[None], h_new[None]


def init_params(key, output_size, embed_size, hidden_size):
    ks = jax.random.split(key, 7)
    scale = 0.1
    return {
        "embedding": scale * jax.random.normal(ks[0], (output_size, embed_size), jnp.float32),
        "w_ih":      scale * jax.random.normal(ks[1], (3 * hidden_size, embed_size), jnp.float32),
        "w_hh":      scale * jax.random.normal(ks[2], (3 * hidden_size, hidden_size), jnp.float32),
        "b_ih":      scale * jax.random.normal(ks[3], (1, 3 * hidden_size), jnp.float32),
        "b_hh":      scale * jax.random.normal(ks[4], (1, 3 * hidden_size), jnp.float32),
        "fc_w":      scale * jax.random.normal(ks[5], (output_size, hidden_size), jnp.float32),
        "fc_b":      scale * jax.random.normal(ks[6], (1, output_size), jnp.float32),
    }


if __name__ == "__main__":
    # Small shapes consistent with the module: output_size=16, embed=32, hidden=32, batch=2.
    OUTPUT_SIZE, EMBED_SIZE, HIDDEN_SIZE, BATCH, SEQ = 16, 32, 32, 2, 8

    key = jax.random.PRNGKey(0)
    kp, ky, kh, ks = jax.random.split(key, 4)
    params = init_params(kp, OUTPUT_SIZE, EMBED_SIZE, HIDDEN_SIZE)
    prepped = prepare_params(params)   # one-time host layout prep (amortized)

    y_out = jax.random.randint(ky, (BATCH,), 0, OUTPUT_SIZE, dtype=jnp.int32)      # token ids [B]
    prev_hidden = jax.random.normal(kh, (1, BATCH, HIDDEN_SIZE), jnp.float32)       # [num_dirs, B, H]

    # --- single step: exact module forward semantics -------------------------------
    pred, hidden = decoder_forward(y_out, prev_hidden, prepped)
    pred, hidden = jax.block_until_ready((pred, hidden))

    pred_ref, hidden_ref = reference_forward(y_out, prev_hidden, params)
    assert pred.shape == (1, BATCH, OUTPUT_SIZE)
    assert hidden.shape == (1, BATCH, HIDDEN_SIZE)
    assert jnp.allclose(pred, pred_ref, atol=1e-5), float(jnp.max(jnp.abs(pred - pred_ref)))
    assert jnp.allclose(hidden, hidden_ref, atol=1e-5), float(jnp.max(jnp.abs(hidden - hidden_ref)))

    # --- T steps fused into one launch (the module forward applied T times) --------
    ids_seq = jax.random.randint(ks, (SEQ, BATCH), 0, OUTPUT_SIZE, dtype=jnp.int32)
    pred_seq, hidden_seq = decoder_decode(ids_seq, prev_hidden, prepped)
    pred_seq, hidden_seq = jax.block_until_ready((pred_seq, hidden_seq))

    h_state = prev_hidden
    preds_ref, hids_ref = [], []
    for tt in range(SEQ):
        p_t, h_state = reference_forward(ids_seq[tt], h_state, params)
        preds_ref.append(p_t[0])
        hids_ref.append(h_state[0])
    preds_ref = jnp.stack(preds_ref)   # [T, B, V]
    hids_ref = jnp.stack(hids_ref)     # [T, B, H]

    assert pred_seq.shape == (SEQ, BATCH, OUTPUT_SIZE)
    assert hidden_seq.shape == (SEQ, BATCH, HIDDEN_SIZE)
    assert jnp.allclose(pred_seq, preds_ref, atol=2e-5), float(jnp.max(jnp.abs(pred_seq - preds_ref)))
    assert jnp.allclose(hidden_seq, hids_ref, atol=2e-5), float(jnp.max(jnp.abs(hidden_seq - hids_ref)))

    print("KERNEL_OK")
</pallas_src>

<mosaic_0001>
module attributes {stable_mosaic.version = 11 : i64} {
  func.func @decoder_kernel(%arg0: i32, %arg1: memref<1x2xi32, #tpu.memory_space<smem>>, %arg2: memref<2x32xf32, #tpu.memory_space<vmem>>, %arg3: memref<48x128xf32, #tpu.memory_space<vmem>>, %arg4: memref<33x16xf32, #tpu.memory_space<vmem>>, %arg5: memref<1x2x48xf32, #tpu.memory_space<vmem>>, %arg6: memref<2x48xf32, #tpu.memory_space<vmem>>, %arg7: memref<2x33xf32, #tpu.memory_space<vmem>>) attributes {dimension_semantics = [#tpu.dimension_semantics<arbitrary>], iteration_bounds = array<i64: 1>, scalar_prefetch = 1 : i64, scratch_operands = 2 : i64, tpu.core_type = #tpu.core_type<tc>, window_params = [{pipeline_mode = #tpu.pipeline_mode<synchronous>, transform_indices = @transform_0, window_bounds = array<i64: 2, 32>}, {pipeline_mode = #tpu.pipeline_mode<synchronous>, transform_indices = @transform_1, window_bounds = array<i64: 48, 128>}, {pipeline_mode = #tpu.pipeline_mode<synchronous>, transform_indices = @transform_2, window_bounds = array<i64: 33, 16>}, {transform_indices = @transform_3, window_bounds = array<i64: 1, 2, 48>}]} {
    %c0_i32 = arith.constant 0 : i32
    %0 = arith.cmpi eq, %arg0, %c0_i32 : i32
    %1 = arith.extui %0 : i1 to i32
    %c0_i32_0 = arith.constant 0 : i32
    %2 = arith.cmpi ne, %1, %c0_i32_0 : i32
    scf.if %2 {
      %c0_28 = arith.constant 0 : index
      %c0_29 = arith.constant 0 : index
      %58 = vector.load %arg2[%c0_28, %c0_29] : memref<2x32xf32, #tpu.memory_space<vmem>>, vector<2x32xf32>
      %c0_30 = arith.constant 0 : index
      %c0_31 = arith.constant 0 : index
      %59 = vector.load %arg7[%c0_30, %c0_31] : memref<2x33xf32, #tpu.memory_space<vmem>>, vector<2x32xf32>
      tpu.vector_store %arg7[%c0_30, %c0_31], %58 {strides = array<i32>} : memref<2x33xf32, #tpu.memory_space<vmem>>, vector<2x32xf32>,
      %cst_32 = arith.constant 1.000000e+00 : f32
      %60 = vector.broadcast %cst_32 : f32 to vector<2x1xf32>
      %c0_33 = arith.constant 0 : index
      %c32_34 = arith.constant 32 : index
      %61 = vector.load %arg7[%c0_33, %c32_34] : memref<2x33xf32, #tpu.memory_space<vmem>>, vector<2x1xf32>
      tpu.vector_store %arg7[%c0_33, %c32_34], %60 {strides = array<i32>} : memref<2x33xf32, #tpu.memory_space<vmem>>, vector<2x1xf32>,
    } else {
    }
    %c0 = arith.constant 0 : index
    %c0_1 = arith.constant 0 : index
    %3 = vector.load %arg7[%c0, %c0_1] : memref<2x33xf32, #tpu.memory_space<vmem>>, vector<2x32xf32>
    %4 = tpu.iota {dimensions = array<i32: 1>} : vector<2x16xi32>
    %5 = tpu.iota {dimensions = array<i32: 0>} : vector<2x16xi32>
    %cst = arith.constant 0.000000e+00 : f32
    %6 = vector.broadcast %cst : f32 to vector<2x16xf32>
    %c0_i32_2 = arith.constant 0 : i32
    %7 = vector.broadcast %c0_i32_2 : i32 to vector<2x16xi32>
    %8 = arith.cmpi eq, %5, %7 : vector<2x16xi32>
    %9 = arith.index_cast %arg0 : i32 to index
    %c0_3 = arith.constant 0 : index
    %10 = memref.load %arg1[%9, %c0_3] : memref<1x2xi32, #tpu.memory_space<smem>>
    %11 = vector.broadcast %10 : i32 to vector<2x16xi32>
    %12 = arith.cmpi eq, %4, %11 : vector<2x16xi32>
    %13 = arith.andi %8, %12 : vector<2x16xi1>
    %cst_4 = arith.constant 1.000000e+00 : f32
    %14 = vector.broadcast %cst_4 : f32 to vector<2x16xf32>
    %15 = arith.select %13, %14, %6 : vector<2x16xi1>, vector<2x16xf32>
    %c1_i32 = arith.constant 1 : i32
    %16 = vector.broadcast %c1_i32 : i32 to vector<2x16xi32>
    %17 = arith.cmpi eq, %5, %16 : vector<2x16xi32>
    %18 = arith.index_cast %arg0 : i32 to index
    %c1 = arith.constant 1 : index
    %19 = memref.load %arg1[%18, %c1] : memref<1x2xi32, #tpu.memory_space<smem>>
    %20 = vector.broadcast %19 : i32 to vector<2x16xi32>
    %21 = arith.cmpi eq, %4, %20 : vector<2x16xi32>
    %22 = arith.andi %17, %21 : vector<2x16xi1>
    %cst_5 = arith.constant 1.000000e+00 : f32
    %23 = vector.broadcast %cst_5 : f32 to vector<2x16xf32>
    %24 = arith.select %22, %23, %15 : vector<2x16xi1>, vector<2x16xf32>
    %c0_6 = arith.constant 0 : index
    %c0_7 = arith.constant 0 : index
    %25 = vector.load %arg6[%c0_6, %c0_7] : memref<2x48xf32, #tpu.memory_space<vmem>>, vector<2x16xf32>
    tpu.vector_store %arg6[%c0_6, %c0_7], %24 {strides = array<i32>} : memref<2x48xf32, #tpu.memory_space<vmem>>, vector<2x16xf32>,
    %c0_8 = arith.constant 0 : index
    %c16 = arith.constant 16 : index
    %26 = vector.load %arg6[%c0_8, %c16] : memref<2x48xf32, #tpu.memory_space<vmem>>, vector<2x32xf32>
    tpu.vector_store %arg6[%c0_8, %c16], %3 {strides = array<i32>} : memref<2x48xf32, #tpu.memory_space<vmem>>, vector<2x32xf32>,
    %c0_9 = arith.constant 0 : index
    %c0_10 = arith.constant 0 : index
    %27 = vector.load %arg6[%c0_9, %c0_10] : memref<2x48xf32, #tpu.memory_space<vmem>>, vector<2x48xf32>
    %c0_11 = arith.constant 0 : index
    %c0_12 = arith.constant 0 : index
    %28 = vector.load %arg3[%c0_11, %c0_12] : memref<48x128xf32, #tpu.memory_space<vmem>>, vector<48x128xf32>
    %cst_13 = arith.constant dense<0.000000e+00> : vector<2x128xf32>
    %29 = tpu.matmul %27, %28, %cst_13 {dimension_numbers = #tpu.dot_dimension_numbers<[1], [0], [0], [1], [0, 0, 1, 1], [], []>} : vector<2x48xf32>, vector<48x128xf32>, vector<2x128xf32> -> vector<2x128xf32>
    %30 = vector.extract_strided_slice %29 {offsets = [0, 0], sizes = [2, 64], strides = [1, 1]} : vector<2x128xf32> to vector<2x64xf32>
    %31 = arith.negf %30 : vector<2x64xf32>
    %32 = math.exp %31 : vector<2x64xf32>
    %cst_14 = arith.constant 1.000000e+00 : f32
    %33 = vector.broadcast %cst_14 : f32 to vector<2x64xf32>
    %34 = arith.addf %33, %32 : vector<2x64xf32>
    %35 = arith.divf %33, %34 : vector<2x64xf32>
    %36 = vector.extract_strided_slice %35 {offsets = [0, 0], sizes = [2, 32], strides = [1, 1]} : vector<2x64xf32> to vector<2x32xf32>
    %37 = vector.extract_strided_slice %35 {offsets = [0, 32], sizes = [2, 32], strides = [1, 1]} : vector<2x64xf32> to vector<2x32xf32>
    %38 = vector.extract_strided_slice %29 {offsets = [0, 64], sizes = [2, 32], strides = [1, 1]} : vector<2x128xf32> to vector<2x32xf32>
    %39 = vector.extract_strided_slice %29 {offsets = [0, 96], sizes = [2, 32], strides = [1, 1]} : vector<2x128xf32> to vector<2x32xf32>
    %40 = arith.mulf %36, %39 : vector<2x32xf32>
    %41 = arith.addf %38, %40 : vector<2x32xf32>
    %42 = math.tanh %41 : vector<2x32xf32>
    %cst_15 = arith.constant 1.000000e+00 : f32
    %43 = vector.broadcast %cst_15 : f32 to vector<2x32xf32>
    %44 = arith.subf %43, %37 : vector<2x32xf32>
    %45 = arith.mulf %44, %42 : vector<2x32xf32>
    %46 = arith.mulf %37, %3 : vector<2x32xf32>
    %47 = arith.addf %45, %46 : vector<2x32xf32>
    %c0_16 = arith.constant 0 : index
    %c0_17 = arith.constant 0 : index
    %48 = vector.load %arg7[%c0_16, %c0_17] : memref<2x33xf32, #tpu.memory_space<vmem>>, vector<2x32xf32>
    tpu.vector_store %arg7[%c0_16, %c0_17], %47 {strides = array<i32>} : memref<2x33xf32, #tpu.memory_space<vmem>>, vector<2x32xf32>,
    %c0_18 = arith.constant 0 : index
    %c0_19 = arith.constant 0 : index
    %49 = vector.load %arg7[%c0_18, %c0_19] : memref<2x33xf32, #tpu.memory_space<vmem>>, vector<2x33xf32>
    %c0_20 = arith.constant 0 : index
    %c0_21 = arith.constant 0 : index
    %50 = vector.load %arg4[%c0_20, %c0_21] : memref<33x16xf32, #tpu.memory_space<vmem>>, vector<33x16xf32>
    %cst_22 = arith.constant dense<0.000000e+00> : vector<2x16xf32>
    %51 = tpu.matmul %49, %50, %cst_22 {dimension_numbers = #tpu.dot_dimension_numbers<[1], [0], [0], [1], [0, 0, 1, 1], [], []>} : vector<2x33xf32>, vector<33x16xf32>, vector<2x16xf32> -> vector<2x16xf32>
    %c0_23 = arith.constant 0 : index
    %c0_24 = arith.constant 0 : index
    %c0_25 = arith.constant 0 : index
    %52 = vector.load %arg5[%c0_23, %c0_24, %c0_25] : memref<1x2x48xf32, #tpu.memory_space<vmem>>, vector<1x2x32xf32>
    %53 = vector.shape_cast %52 : vector<1x2x32xf32> to vector<2x32xf32>
    %54 = vector.shape_cast %47 : vector<2x32xf32> to vector<1x2x32xf32>
    tpu.vector_store %arg5[%c0_23, %c0_24, %c0_25], %54 {strides = array<i32>} : memref<1x2x48xf32, #tpu.memory_space<vmem>>, vector<1x2x32xf32>,
    %c0_26 = arith.constant 0 : index
    %c0_27 = arith.constant 0 : index
    %c32 = arith.constant 32 : index
    %55 = vector.load %arg5[%c0_26, %c0_27, %c32] : memref<1x2x48xf32, #tpu.memory_space<vmem>>, vector<1x2x16xf32>
    %56 = vector.shape_cast %55 : vector<1x2x16xf32> to vector<2x16xf32>
    %57 = vector.shape_cast %51 : vector<2x16xf32> to vector<1x2x16xf32>
    tpu.vector_store %arg5[%c0_26, %c0_27, %c32], %57 {strides = array<i32>} : memref<1x2x48xf32, #tpu.memory_space<vmem>>, vector<1x2x16xf32>,
    return
  }
  func.func @transform_0(%arg0: i32, %arg1: memref<1x2xi32, #tpu.memory_space<smem>>) -> (i32, i32) {
    %c0_i32 = arith.constant 0 : i32
    %c0_i32_0 = arith.constant 0 : i32
    %c0_i32_1 = arith.constant 0 : i32
    return %c0_i32, %c0_i32_0 : i32, i32
  }
  func.func @transform_1(%arg0: i32, %arg1: memref<1x2xi32, #tpu.memory_space<smem>>) -> (i32, i32) {
    %c0_i32 = arith.constant 0 : i32
    %c0_i32_0 = arith.constant 0 : i32
    %c0_i32_1 = arith.constant 0 : i32
    return %c0_i32, %c0_i32_0 : i32, i32
  }
  func.func @transform_2(%arg0: i32, %arg1: memref<1x2xi32, #tpu.memory_space<smem>>) -> (i32, i32) {
    %c0_i32 = arith.constant 0 : i32
    %c0_i32_0 = arith.constant 0 : i32
    %c0_i32_1 = arith.constant 0 : i32
    return %c0_i32, %c0_i32_0 : i32, i32
  }
  func.func @transform_3(%arg0: i32, %arg1: memref<1x2xi32, #tpu.memory_space<smem>>) -> (i32, i32, i32) {
    %c0_i32 = arith.constant 0 : i32
    %c0_i32_0 = arith.constant 0 : i32
    %c0_i32_1 = arith.constant 0 : i32
    return %arg0, %c0_i32, %c0_i32_0 : i32, i32, i32
  }
}

</mosaic_0001>

<llo_original>
// kernel: tpu_custom_call.1
$region0: #{tpu_custom_call.1}
  #allocation0 [shape = 'u32[]', space=smem, size = 0x4, offset = 0x4, fixed_abs, tag = 'smem constant byte address 0x4 - core index']
  #allocation1 [shape = 'u32[72,128]{1,0:T(1,128)}', space=vmem, size = 0x9000, scoped, tag = 'internal scratch']
  #allocation2 [shape = 'f32[2,48]{1,0:T(2,128)}', space=vmem, size = 0x400, scoped, tag = 'scratch operand']
  #allocation3 [shape = 'f32[2,33]{1,0:T(2,128)}', space=vmem, size = 0x400, scoped, tag = 'scratch operand']
  #allocation4 [shape = 's32[1]{0}', space=sflag, size = 0x4, scoped, tag = 'scoped memory for tpu_custom_call.1']
  #allocation5 [shape = 'u8[512]{0}', space=smem, size = 0x200, scoped, tag = 'prefetched SMEM operand 0']
  %s0 = inlined_call_operand.vmem [shape: s32[1,2], index: 0, kind: input, shape index: {}]
  %s1 = inlined_call_operand.vmem [shape: f32[2,32], index: 1, kind: input, shape index: {}]
  %s2 = inlined_call_operand.vmem [shape: f32[48,128], index: 2, kind: input, shape index: {}]
  %s3 = inlined_call_operand.vmem [shape: f32[33,16], index: 3, kind: input, shape index: {}]
  %s4 = inlined_call_operand.hbm [shape: f32[1,2,48], index: 4, kind: output, shape index: {}]
  %s5 = sld [smem:[#allocation0]]
  $region26: #{tpu_custom_call.1} parent=0
    _
  %s7 = ssub.s32 1, %s5
  %s8 = scalar_select 0, %s7, %s5
  %s10 = sshll.u32 %s0, 4
  %s11 = int_to_ptr.vmem [resolvable:$true] %s10
  %13 = dma.vmem_to_smem %s11, 16, [#allocation5], [#allocation4]
  %15 = dma.done [#allocation4], 16
  %16 = sfence
  $region1: #{tpu_custom_call.1} parent=0
    #allocation6 [shape = 'u8[1024]{0}', space=vmem, size = 0x400, scoped, tag = 'output window, operand 0, single buffered']
    #allocation7 [shape = 's32[1]{0}', space=sflag, size = 0x4, scoped, tag = 'scoped memory for tpu_custom_call.1']
    %17 = vsyncpa [#allocation7], 0
    // Predicated region
    $region2: #{tpu_custom_call.1} parent=1 // pred_check
      _
    $region3: #{tpu_custom_call.1} parent=1 // pred_check_branch
      %19 = sbr.rel (0) target = $region5
    $region4: #{tpu_custom_call.1} parent=1 // pred_region
      _
    $region5: #{tpu_custom_call.1} parent=1 // pred_fallthru
      _
    // Predicated region
    $region6: #{tpu_custom_call.1} parent=1 // pred_check
      _
    $region7: #{tpu_custom_call.1} parent=1 // pred_check_branch
      %21 = sbr.rel (0) target = $region9
    $region8: #{tpu_custom_call.1} parent=1 // pred_region
      _
    $region9: #{tpu_custom_call.1} parent=1 // pred_fallthru
      _
    // Predicated region
    $region10: #{tpu_custom_call.1} parent=1 // pred_check
      _
    $region11: #{tpu_custom_call.1} parent=1 // pred_check_branch
      %23 = sbr.rel (0) target = $region13
    $region12: #{tpu_custom_call.1} parent=1 // pred_region
      _
    $region13: #{tpu_custom_call.1} parent=1 // pred_fallthru
      _
    %p24 = scmp.eq.s32.totalorder 0, 0
    // Predicated region
    $region14: #{tpu_custom_call.1} parent=1 // pred_check
      %p25 = pneg %p24
    $region15: #{tpu_custom_call.1} parent=1 // pred_check_branch
      %27 = sbr.rel (%p25) target = $region17
    $region16: #{tpu_custom_call.1} parent=1 // pred_region
      %v28 = vld [vmem:[%s1] sm:$0x3]
      %vm29 = vcmask 254976
      %30 = vst.msk [vmem:[#allocation3] sm:$0x3] %vm29, %v28
      %vm31 = vcmask 263424
      %32 = vst.msk [vmem:[#allocation3] sm:$0x3] %vm31, 1.0
    $region17: #{tpu_custom_call.1} parent=1 // pred_fallthru
      _
    %v33 = vld [vmem:[#allocation3] sm:$0x3]
    %v34 = vlaneseq
    %v35 = vand.u32 %v34, 127
    %v36 = vlaneseq
    %v37 = vshrl.u32 %v36, 7
    %vm38 = vcmp.eq.s32.totalorder %v37, 0
    %s39 = smul.u32 0, 128
    %s40 = sld [smem:[#allocation5 + %s39]]
    %v41 = vstv %s40
    %vm42 = vcmp.eq.s32.totalorder %v35, %v41
    %vm43 = vmand %vm38, %vm42
    %v44 = vsel %vm43, 1.0, 0.0
    %vm45 = vcmp.eq.s32.totalorder %v37, 1
    %s46 = sadd.s32 %s39, 1
    %s47 = sld [smem:[#allocation5 + %s46]]
    %v48 = vstv %s47
    %vm49 = vcmp.eq.s32.totalorder %v35, %v48
    %vm50 = vmand %vm45, %vm49
    %v51 = vsel %vm50, 1.0, %v44
    %vm52 = vcmask 123904
    %53 = vst.msk [vmem:[#allocation2] sm:$0x3] %vm52, %v51
    %55 = vrot.lane.b32.xlu0 %v33, 16
    %v56 = vpop.permute.xlu0 %55
    %vm58 = vcmask 386176
    %59 = vst.msk [vmem:[#allocation2] sm:$0x3] %vm58, %v56
    %v60 = vld [vmem:[#allocation2] sm:$0x3]
    %v61 = vld [vmem:[%s2] sm:$0xff]
    %v62 = vld [vmem:[%s2 + $0x8] sm:$0xff]
    %v63 = vld [vmem:[%s2 + $0x10] sm:$0xff]
    %v64 = vld [vmem:[%s2 + $0x18] sm:$0xff]
    %v65 = vld [vmem:[%s2 + $0x20] sm:$0xff]
    %v66 = vld [vmem:[%s2 + $0x28] sm:$0xff]
    %vm67 = vcmask 392192
    %v69 = vsel %vm67, %v60, 0
    %71 = vmatpush.msra.mxu0 0.0
    %72 = vmatpush.msra.mxu0 0.0
    %73 = vmatpush.msra.mxu0 0.0
    %74 = vmatpush.msra.mxu0 0.0
    %75 = vmatpush.msra.mxu0 0.0
    %76 = vmatpush.msra.mxu0 0.0
    %77 = vmatpush.msra.mxu0 0.0
    %78 = vmatpush.msra.mxu0 0.0
    %79 = vmatpush.msra.mxu0 0.0
    %80 = vmatpush.msra.mxu0 0.0
    %81 = vmatpush.msra.mxu0 %v66
    %82 = vmatpush.msra.mxu0 %v65
    %83 = vmatpush.msra.mxu0 %v64
    %84 = vmatpush.msra.mxu0 %v63
    %85 = vmatpush.msra.mxu0 %v62
    %86 = vmatpush.msra.mxu0 %v61
    %87 = vmatmul.f32.gmra.mxu0 %v69
    %v88 = vpop.f32.mrf.mxu0
    %v89 = vadd.f32 0.0, %v88
    %90 = vdwg.mxu0
    %v91 = vxor.u32 %v89, 2147483648
    %v92 = vmul.f32 %v91, 1.442695
    %v93 = vpow.pop %v92
    %v94 = vadd.f32 %v93, 1.0
    %v95 = vrcp.pop %v94
    %v96 = vmul.f32 %v94, %v95
    %v97 = vsub.f32 1.0, %v96
    %v98 = vmul.f32 %v95, %v97
    %v99 = vadd.f32 %v95, %v98
    %vm100 = vweird.f32 %v94
    %vm101 = vweird.f32 %v95
    %vm102 = vmor %vm100, %vm101
    %v103 = vsel %vm102, %v95, %v99
    %v104 = vand.u32 2147483647, %v94
    %vm105 = vcmp.eq.f32.partialorder %v104, 8.507059e+37
    %v106 = vand.u32 %v94, 2147483648
    %v107 = vor.u32 1.1754944e-38, %v106
    %v108 = vsel %vm105, %v107, %v103
    %v109 = vmul.f32 1.0, %v108
    %111 = vrot.lane.b32.xlu0 %v89, 32
    %v112 = vpop.permute.xlu0 %111
    %v114 = vmul.f32 %v109, %v112
    %116 = vrot.lane.b32.xlu0 %v114, 64
    %v117 = vpop.permute.xlu0 %116
    %v119 = vadd.f32 %v89, %v117
    %v120 = vtanh.pop %v119
    %v121 = vsub.f32 1.0, %v109
    %123 = vrot.lane.b32.xlu0 %v120, 96
    %v124 = vpop.permute.xlu0 %123
    %v126 = vmul.f32 %v121, %v124
    %127 = vrot.lane.b32.xlu0 %v33, 32
    %v128 = vpop.permute.xlu0 %127
    %v130 = vmul.f32 %v109, %v128
    %v131 = vadd.f32 %v126, %v130
    %133 = vrot.lane.b32.xlu0 %v131, 96
    %v134 = vpop.permute.xlu0 %133
    %vm136 = vcmask 254976
    %137 = vst.msk [vmem:[#allocation3] sm:$0x3] %vm136, %v134
    %v138 = vld [vmem:[#allocation3] sm:$0x3]
    %v139 = vld [vmem:[%s3] sm:$0xff]
    %v140 = vld [vmem:[%s3 + $0x8] sm:$0xff]
    %v141 = vld [vmem:[%s3 + $0x10] sm:$0xff]
    %v142 = vld [vmem:[%s3 + $0x18] sm:$0xff]
    %v143 = vld [vmem:[%s3 + $0x20] sm:$0x1]
    %vm144 = vcmask 269312
    %v146 = vsel %vm144, %v138, 0
    %vm148 = vcmask 1040384
    %v150 = vsel %vm148, %v143, 0
    %152 = vmatpush.msra.mxu0 0.0
    %153 = vmatpush.msra.mxu0 0.0
    %154 = vmatpush.msra.mxu0 0.0
    %155 = vmatpush.msra.mxu0 0.0
    %156 = vmatpush.msra.mxu0 0.0
    %157 = vmatpush.msra.mxu0 0.0
    %158 = vmatpush.msra.mxu0 0.0
    %159 = vmatpush.msra.mxu0 0.0
    %160 = vmatpush.msra.mxu0 0.0
    %161 = vmatpush.msra.mxu0 0.0
    %162 = vmatpush.msra.mxu0 0.0
    %163 = vmatpush.msra.mxu0 %v150
    %164 = vmatpush.msra.mxu0 %v142
    %165 = vmatpush.msra.mxu0 %v141
    %166 = vmatpush.msra.mxu0 %v140
    %167 = vmatpush.msra.mxu0 %v139
    %168 = vmatmul.f32.gmra.mxu0 %v146
    %v169 = vpop.f32.mrf.mxu0
    %v170 = vadd.f32 0.0, %v169
    %171 = vdwg.mxu0
    %172 = vst.msk [vmem:[#allocation6] sm:$0x3] %vm136, %v134
    %174 = vrot.lane.b32.xlu0 %v170, 32
    %v175 = vpop.permute.xlu0 %174
    %vm177 = vcmask 386304
    %178 = vst.msk [vmem:[#allocation6] sm:$0x3] %vm177, %v175
    // Predicated region
    $region18: #{tpu_custom_call.1} parent=1 // pred_check
      _
    $region19: #{tpu_custom_call.1} parent=1 // pred_check_branch
      %180 = sbr.rel (0) target = $region21
    $region20: #{tpu_custom_call.1} parent=1 // pred_region
      %182 = vsyncadd [#allocation7], 0
      %s184 = sshll.u32 [#allocation6], 4
      %s185 = int_to_ptr.vmem [resolvable:$true] %s184
      %s186 = sshll.u32 %s4, 4
      %s187 = int_to_ptr.hbm [resolvable:$true] %s186
      %189 = dma.vmem_to_hbm [thread:$0]  %s185, 32, %s187, [#allocation7]
    $region21: #{tpu_custom_call.1} parent=1 // pred_fallthru
      _
    // Predicated region
    $region22: #{tpu_custom_call.1} parent=1 // pred_check
      _
    $region23: #{tpu_custom_call.1} parent=1 // pred_check_branch
      %191 = sbr.rel (0) target = $region25
    $region24: #{tpu_custom_call.1} parent=1 // pred_region
      %193 = dma.done [#allocation7], 32
    $region25: #{tpu_custom_call.1} parent=1 // pred_fallthru
      _
    %194 = vsyncpa [#allocation7], 1

</llo_original>
